<compile_context>
chip_gen: v6e
topology: v6e:2x2x1
jax: 0.10.0
libtpu: 0.0.40
codegen_flags: <defaults>
</compile_context>

<pallas_src>
import functools

import jax
import jax.numpy as jnp
import numpy as np
from jax.experimental import pallas as pl
from jax.experimental.pallas import tpu as pltpu

_MASK_NEG = -(2.0 ** 30)   # additive mask value; exactly representable in bf16
_LANE = 128


def _choose_tiles(n):
    """(dst_tile, src_tile) for the attention grid.

    Mask blocks need a lane-dim that is a multiple of 128 (or the full array);
    dst tiles a multiple of 8 (or the full array).
    """
    if n % _LANE:
        return n, n                        # small / ragged graph: single block
    td = _LANE
    for ts in (512, 256, _LANE):           # larger src tiles amortize per-step overhead
        if n % ts == 0 and n // ts >= 2:
            return td, ts
    return td, _LANE


def _proj_tile(n):
    return _LANE if n % _LANE == 0 else n


# ---------------------------------------------------------------------------
# Pallas kernels
# ---------------------------------------------------------------------------
def gatv2_proj_kernel(x_ref, wl_ref, wr_ref, bl_ref, br_ref, xl_ref, xr_ref):
    """GATv2 lin_l / lin_r projections: bf16 MXU matmuls, f32 accumulation."""
    x = x_ref[...].astype(jnp.bfloat16)
    xl_ref[...] = (jnp.dot(x, wl_ref[...].astype(jnp.bfloat16),
                           preferred_element_type=jnp.float32) + bl_ref[...])
    xr_ref[...] = (jnp.dot(x, wr_ref[...].astype(jnp.bfloat16),
                           preferred_element_type=jnp.float32) + br_ref[...])


def gatv2_attn_kernel(xr_ref, xlt_ref, xl_ref, att_ref, bias_ref, mask_ref,
                      out_ref, m_sc, l_sc, acc_sc, *,
                      negative_slope, activation):
    """One (head, dst-tile, src-tile) step of blocked GATv2 attention.

    The src grid axis carries a flash-attention style online softmax whose
    running max / running sum / accumulator live in VMEM scratch.
    """
    s_idx = pl.program_id(2)

    @pl.when(s_idx == 0)
    def _init():
        m_sc[...] = jnp.full(m_sc.shape, -jnp.inf, jnp.float32)
        l_sc[...] = jnp.zeros(l_sc.shape, jnp.float32)
        acc_sc[...] = jnp.zeros(acc_sc.shape, jnp.float32)

    xr = xr_ref[0]                                  # [TD, C]  dst side (lin_r)
    xlt = xlt_ref[0]                                # [C, TS]  src side (lin_l), transposed
    att = att_ref[0]                                # [1, C]
    mask = mask_ref[...].astype(jnp.float32)        # [TD, TS]: 0 or -2^30

    # GATv2 logits: att . leaky_relu(xr_i + xl_j) + mask_ij, accumulated per
    # channel so every intermediate stays a lane-dense [TD, TS] tile and only
    # native size-1 broadcasts are used (no padded 3-D pairwise tensor).
    logits = mask
    num_ch = xr.shape[-1]
    for c in range(num_ch):
        z_c = xr[:, c:c + 1] + xlt[c:c + 1, :]                     # [TD, TS]
        z_c = jnp.where(z_c >= 0.0, z_c, negative_slope * z_c)
        logits = logits + att[:, c:c + 1] * z_c

    # Online softmax over incoming edges (source tiles).
    m_prev = m_sc[...]                                             # [TD, 1]
    m_new = jnp.maximum(m_prev, jnp.max(logits, axis=-1, keepdims=True))
    corr = jnp.exp(m_prev - m_new)
    p = jnp.exp(logits - m_new)                                    # [TD, TS]
    l_sc[...] = corr * l_sc[...] + jnp.sum(p, axis=-1, keepdims=True)
    acc_sc[...] = corr * acc_sc[...] + jnp.dot(
        p.astype(jnp.bfloat16), xl_ref[0].astype(jnp.bfloat16),
        preferred_element_type=jnp.float32)                        # [TD, C]
    m_sc[...] = m_new

    @pl.when(s_idx == pl.num_programs(2) - 1)
    def _finalize():
        out = acc_sc[...] * pl.reciprocal(l_sc[...], approx=True) + bias_ref[0]
        if activation == "relu":
            out = jnp.maximum(out, 0.0)
        elif activation == "elu":
            out = jnp.where(out > 0, out, jnp.exp(out) - 1.0)
        # activation None -> identity
        out_ref[...] = out[None].astype(out_ref.dtype)


# ---------------------------------------------------------------------------
# Per-layer wrapper (two pallas_calls + cheap XLA layout plumbing)
# ---------------------------------------------------------------------------
def gatv2_layer(x, params, mask_bias, *, heads, out_ch, negative_slope, activation):
    n, fin = x.shape
    hc = heads * out_ch

    # ---- (1) projections ----------------------------------------------------
    tn = _proj_tile(n)
    xl, xr = pl.pallas_call(
        gatv2_proj_kernel,
        out_shape=(jax.ShapeDtypeStruct((n, hc), jnp.float32),
                   jax.ShapeDtypeStruct((n, hc), jnp.float32)),
        grid_spec=pltpu.PrefetchScalarGridSpec(
            num_scalar_prefetch=0,
            grid=(n // tn,),
            in_specs=[
                pl.BlockSpec((tn, fin), lambda i: (i, 0)),
                pl.BlockSpec((fin, hc), lambda i: (0, 0)),
                pl.BlockSpec((fin, hc), lambda i: (0, 0)),
                pl.BlockSpec((1, hc), lambda i: (0, 0)),
                pl.BlockSpec((1, hc), lambda i: (0, 0)),
            ],
            out_specs=[pl.BlockSpec((tn, hc), lambda i: (i, 0)),
                       pl.BlockSpec((tn, hc), lambda i: (i, 0))],
        ),
        compiler_params=pltpu.CompilerParams(dimension_semantics=("parallel",)),
    )(x, params["wl"], params["wr"], params["bl"], params["br"])

    # Head-major layouts (tiny tensors; pure XLA layout plumbing).
    xl_h = xl.reshape(n, heads, out_ch).transpose(1, 0, 2)        # [H, N, C]
    xr_h = xr.reshape(n, heads, out_ch).transpose(1, 0, 2)        # [H, N, C]
    xlt_h = xl_h.transpose(0, 2, 1)                               # [H, C, N]
    att_h = params["att"][:, None, :]                             # [H, 1, C]
    bias_h = params["bias"].reshape(heads, 1, out_ch)             # [H, 1, C]

    # ---- (2) blocked attention with online softmax ----------------------------
    td, ts = _choose_tiles(n)
    kernel = functools.partial(gatv2_attn_kernel,
                               negative_slope=negative_slope,
                               activation=activation)
    out_h = pl.pallas_call(
        kernel,
        out_shape=jax.ShapeDtypeStruct((heads, n, out_ch), jnp.float32),
        grid_spec=pltpu.PrefetchScalarGridSpec(
            num_scalar_prefetch=0,
            grid=(heads, n // td, n // ts),
            in_specs=[
                pl.BlockSpec((1, td, out_ch), lambda h, d, s: (h, d, 0)),   # xr (dst)
                pl.BlockSpec((1, out_ch, ts), lambda h, d, s: (h, 0, s)),   # xl^T (src)
                pl.BlockSpec((1, ts, out_ch), lambda h, d, s: (h, s, 0)),   # xl (src)
                pl.BlockSpec((1, 1, out_ch), lambda h, d, s: (h, 0, 0)),    # att
                pl.BlockSpec((1, 1, out_ch), lambda h, d, s: (h, 0, 0)),    # bias
                pl.BlockSpec((td, ts), lambda h, d, s: (d, s)),             # bf16 mask
            ],
            out_specs=pl.BlockSpec((1, td, out_ch), lambda h, d, s: (h, d, 0)),
            scratch_shapes=[
                pltpu.VMEM((td, 1), jnp.float32),       # running max
                pltpu.VMEM((td, 1), jnp.float32),       # running sum
                pltpu.VMEM((td, out_ch), jnp.float32),  # output accumulator
            ],
        ),
        compiler_params=pltpu.CompilerParams(
            dimension_semantics=("parallel", "parallel", "arbitrary")),
    )(xr_h, xlt_h, xl_h, att_h, bias_h, mask_bias)

    # [H, N, C] -> [N, H*C]  (head concat; .flatten(1) equivalent)
    return out_h.transpose(1, 0, 2).reshape(n, hc)


# ---------------------------------------------------------------------------
# Plain-JAX glue: params, adjacency -> additive mask, MGAT wrapper
# ---------------------------------------------------------------------------
def init_gatv2_params(key, in_dim, out_ch, heads):
    k = jax.random.split(key, 3)
    glorot_w = (2.0 / (in_dim + heads * out_ch)) ** 0.5
    glorot_a = (2.0 / (1 + out_ch)) ** 0.5
    return dict(
        wl=jax.random.normal(k[0], (in_dim, heads * out_ch), jnp.float32) * glorot_w,
        wr=jax.random.normal(k[1], (in_dim, heads * out_ch), jnp.float32) * glorot_w,
        bl=jnp.zeros((1, heads * out_ch), jnp.float32),
        br=jnp.zeros((1, heads * out_ch), jnp.float32),
        att=jax.random.normal(k[2], (heads, out_ch), jnp.float32) * glorot_a,
        bias=jnp.zeros((1, heads * out_ch), jnp.float32),
    )


def build_mask_bias(edge_index, num_nodes):
    """Densify edge_index into an additive attention-mask bias (bf16).

    mask[i, j] = 0 for edge j->i and for the forced self-loop i == j
    (matching PyG remove_self_loops + add_self_loops), else -2^30.
    """
    src, dst = edge_index[0], edge_index[1]
    adj = jnp.zeros((num_nodes, num_nodes), jnp.float32).at[dst, src].set(1.0)
    diag = jnp.arange(num_nodes)
    adj = adj.at[diag, diag].set(1.0)
    return jnp.where(adj > 0, 0.0, _MASK_NEG).astype(jnp.bfloat16)


class MGATPallas:
    _multi_head = {"concat", "avg"}

    def __init__(self, num_hidden, in_dim, hidden_dim, output_dim, heads,
                 activation="relu", aggregation="concat", negative_slope=0.2,
                 key=None):
        aggregation = aggregation.lower()
        if aggregation not in self._multi_head:
            raise ValueError(f"Unrecognized aggregation mode: {aggregation}")
        if aggregation != "concat":
            # TODO(synk): 'avg' path (h.mean(1) of the concatenated 2D output) not wired up.
            raise NotImplementedError("only aggregation='concat' is implemented")
        if key is None:
            key = jax.random.PRNGKey(0)
        self.aggregation = aggregation
        self.activation = activation
        self.negative_slope = negative_slope
        self.layer_cfgs = []

        keys = jax.random.split(key, num_hidden)
        out_dim = output_dim if num_hidden == 1 else hidden_dim
        self.layer_cfgs.append(
            (init_gatv2_params(keys[0], in_dim, out_dim, heads[0]), heads[0], out_dim))
        for l in range(1, num_hidden):
            inf = hidden_dim * heads[l - 1]
            out_dim = output_dim if l == num_hidden - 1 else hidden_dim
            self.layer_cfgs.append(
                (init_gatv2_params(keys[l], inf, out_dim, heads[l]), heads[l], out_dim))

    def __call__(self, graph_tuple, inputs):
        edge_index, edge_weight, total_nodes = graph_tuple  # edge_weight unused (as in torch)
        mask_bias = build_mask_bias(edge_index, total_nodes)
        # TODO(synk): for very small graphs, fuse all layers into one pallas_call
        # that keeps h resident in VMEM to amortize per-call launch overhead.
        h = inputs
        layer_outputs = []
        for params, heads, out_ch in self.layer_cfgs:
            h = gatv2_layer(h, params, mask_bias,
                            heads=heads, out_ch=out_ch,
                            negative_slope=self.negative_slope,
                            activation=self.activation)
            layer_outputs.append(h)
        return layer_outputs, [o.shape for o in layer_outputs]


# ---------------------------------------------------------------------------
# Pure-JAX reference (for the correctness check)
# ---------------------------------------------------------------------------
def gatv2_reference(x, params, mask_bias, heads, out_ch, negative_slope, activation):
    """Mirrors the kernel's bf16 matmul operands (f32 accumulation); softmax in
    f32.  The kernel additionally uses the EUP approximate reciprocal, hence
    the ~3e-2 comparison tolerance."""
    n = x.shape[0]
    b16 = jnp.bfloat16
    xb = x.astype(b16)
    xl = (jnp.dot(xb, params["wl"].astype(b16), preferred_element_type=jnp.float32)
          + params["bl"]).reshape(n, heads, out_ch)
    xr = (jnp.dot(xb, params["wr"].astype(b16), preferred_element_type=jnp.float32)
          + params["br"]).reshape(n, heads, out_ch)
    z = xr[:, None, :, :] + xl[None, :, :, :]                 # [dst i, src j, h, c]
    z = jnp.where(z >= 0, z, negative_slope * z)
    logits = (jnp.einsum("ijhc,hc->ijh", z, params["att"])
              + mask_bias.astype(jnp.float32)[:, :, None])
    m = logits.max(axis=1, keepdims=True)
    p = jnp.exp(logits - m)
    alpha = p / p.sum(axis=1, keepdims=True)
    out = jnp.einsum("ijh,jhc->ihc", alpha.astype(b16), xl.astype(b16),
                     preferred_element_type=jnp.float32).reshape(n, heads * out_ch)
    out = out + params["bias"]
    if activation == "relu":
        out = jnp.maximum(out, 0.0)
    elif activation == "elu":
        out = jnp.where(out > 0, out, jnp.exp(out) - 1.0)
    return out


if __name__ == "__main__":
    N = 256                     # multiple of 128 -> exercises the tiled grid & online softmax
    in_dim, hidden_dim, output_dim = 16, 8, 4
    heads = [2, 2]
    num_hidden = 2

    # Deterministic graph: "cluster" edges (i ≡ j mod 5, i != j) plus a ring.
    ii, jj = np.meshgrid(np.arange(N), np.arange(N), indexing="ij")
    cluster = ((ii - jj) % 5 == 0) & (ii != jj)
    src = np.concatenate([ii[cluster], np.arange(N)])
    dst = np.concatenate([jj[cluster], (np.arange(N) + 1) % N])
    edge_index = jnp.array(np.stack([src, dst]), dtype=jnp.int32)   # [2, E] row0=src, row1=dst
    edge_weight = jnp.ones((edge_index.shape[1],), jnp.float32)
    graph_tuple = (edge_index, edge_weight, N)

    key = jax.random.PRNGKey(0)
    kx, kp = jax.random.split(key)
    x = jax.random.normal(kx, (N, in_dim), jnp.float32)

    model = MGATPallas(num_hidden, in_dim, hidden_dim, output_dim, heads,
                       activation="relu", aggregation="concat", key=kp)

    layer_outputs, shapes = model(graph_tuple, x)
    layer_outputs = [jax.block_until_ready(o) for o in layer_outputs]

    # Correctness check vs. pure-JAX reference (same bf16 matmul precision).
    mask_bias = build_mask_bias(edge_index, N)
    h_ref = x
    for (params, hds, oc), out in zip(model.layer_cfgs, layer_outputs):
        h_ref = gatv2_reference(h_ref, params, mask_bias, hds, oc, 0.2, "relu")
        np.testing.assert_allclose(np.asarray(out), np.asarray(h_ref),
                                   rtol=3e-2, atol=3e-2)

    assert shapes == [(N, hidden_dim * heads[0]), (N, output_dim * heads[1])]
    print("KERNEL_OK")
</pallas_src>

<mosaic_0001>
module attributes {stable_mosaic.version = 11 : i64} {
  func.func @gatv2_proj_kernel(%arg0: i32, %arg1: memref<128x16xf32, #tpu.memory_space<vmem>>, %arg2: memref<16x16xf32, #tpu.memory_space<vmem>>, %arg3: memref<16x16xf32, #tpu.memory_space<vmem>>, %arg4: memref<1x16xf32, #tpu.memory_space<vmem>>, %arg5: memref<1x16xf32, #tpu.memory_space<vmem>>, %arg6: memref<128x16xf32, #tpu.memory_space<vmem>>, %arg7: memref<128x16xf32, #tpu.memory_space<vmem>>) attributes {dimension_semantics = [#tpu.dimension_semantics<parallel>], iteration_bounds = array<i64: 2>, scalar_prefetch = 0 : i64, scratch_operands = 0 : i64, tpu.core_type = #tpu.core_type<tc>, window_params = [{transform_indices = @transform_0, window_bounds = array<i64: 128, 16>}, {pipeline_mode = #tpu.pipeline_mode<synchronous>, transform_indices = @transform_1, window_bounds = array<i64: 16, 16>}, {pipeline_mode = #tpu.pipeline_mode<synchronous>, transform_indices = @transform_2, window_bounds = array<i64: 16, 16>}, {pipeline_mode = #tpu.pipeline_mode<synchronous>, transform_indices = @transform_3, window_bounds = array<i64: 1, 16>}, {pipeline_mode = #tpu.pipeline_mode<synchronous>, transform_indices = @transform_4, window_bounds = array<i64: 1, 16>}, {transform_indices = @transform_5, window_bounds = array<i64: 128, 16>}, {transform_indices = @transform_6, window_bounds = array<i64: 128, 16>}]} {
    %c0 = arith.constant 0 : index
    %c0_0 = arith.constant 0 : index
    %0 = vector.load %arg1[%c0, %c0_0] : memref<128x16xf32, #tpu.memory_space<vmem>>, vector<128x16xf32>
    %1 = arith.truncf %0 : vector<128x16xf32> to vector<128x16xbf16>
    %c0_1 = arith.constant 0 : index
    %c0_2 = arith.constant 0 : index
    %2 = vector.load %arg2[%c0_1, %c0_2] : memref<16x16xf32, #tpu.memory_space<vmem>>, vector<16x16xf32>
    %3 = arith.truncf %2 : vector<16x16xf32> to vector<16x16xbf16>
    %cst = arith.constant dense<0.000000e+00> : vector<128x16xf32>
    %4 = tpu.matmul %1, %3, %cst {dimension_numbers = #tpu.dot_dimension_numbers<[1], [0], [0], [1], [0, 0, 1, 1], [], []>} : vector<128x16xbf16>, vector<16x16xbf16>, vector<128x16xf32> -> vector<128x16xf32>
    %c0_3 = arith.constant 0 : index
    %c0_4 = arith.constant 0 : index
    %5 = vector.load %arg4[%c0_3, %c0_4] : memref<1x16xf32, #tpu.memory_space<vmem>>, vector<1x16xf32>
    %6 = vector.broadcast %5 : vector<1x16xf32> to vector<128x16xf32>
    %7 = arith.addf %4, %6 : vector<128x16xf32>
    %c0_5 = arith.constant 0 : index
    %c0_6 = arith.constant 0 : index
    %8 = vector.load %arg6[%c0_5, %c0_6] : memref<128x16xf32, #tpu.memory_space<vmem>>, vector<128x16xf32>
    tpu.vector_store %arg6[%c0_5, %c0_6], %7 {strides = array<i32>} : memref<128x16xf32, #tpu.memory_space<vmem>>, vector<128x16xf32>,
    %c0_7 = arith.constant 0 : index
    %c0_8 = arith.constant 0 : index
    %9 = vector.load %arg3[%c0_7, %c0_8] : memref<16x16xf32, #tpu.memory_space<vmem>>, vector<16x16xf32>
    %10 = arith.truncf %9 : vector<16x16xf32> to vector<16x16xbf16>
    %cst_9 = arith.constant dense<0.000000e+00> : vector<128x16xf32>
    %11 = tpu.matmul %1, %10, %cst_9 {dimension_numbers = #tpu.dot_dimension_numbers<[1], [0], [0], [1], [0, 0, 1, 1], [], []>} : vector<128x16xbf16>, vector<16x16xbf16>, vector<128x16xf32> -> vector<128x16xf32>
    %c0_10 = arith.constant 0 : index
    %c0_11 = arith.constant 0 : index
    %12 = vector.load %arg5[%c0_10, %c0_11] : memref<1x16xf32, #tpu.memory_space<vmem>>, vector<1x16xf32>
    %13 = vector.broadcast %12 : vector<1x16xf32> to vector<128x16xf32>
    %14 = arith.addf %11, %13 : vector<128x16xf32>
    %c0_12 = arith.constant 0 : index
    %c0_13 = arith.constant 0 : index
    %15 = vector.load %arg7[%c0_12, %c0_13] : memref<128x16xf32, #tpu.memory_space<vmem>>, vector<128x16xf32>
    tpu.vector_store %arg7[%c0_12, %c0_13], %14 {strides = array<i32>} : memref<128x16xf32, #tpu.memory_space<vmem>>, vector<128x16xf32>,
    return
  }
  func.func @transform_0(%arg0: i32) -> (i32, i32) {
    %c0_i32 = arith.constant 0 : i32
    %c0_i32_0 = arith.constant 0 : i32
    return %arg0, %c0_i32 : i32, i32
  }
  func.func @transform_1(%arg0: i32) -> (i32, i32) {
    %c0_i32 = arith.constant 0 : i32
    %c0_i32_0 = arith.constant 0 : i32
    %c0_i32_1 = arith.constant 0 : i32
    return %c0_i32, %c0_i32_0 : i32, i32
  }
  func.func @transform_2(%arg0: i32) -> (i32, i32) {
    %c0_i32 = arith.constant 0 : i32
    %c0_i32_0 = arith.constant 0 : i32
    %c0_i32_1 = arith.constant 0 : i32
    return %c0_i32, %c0_i32_0 : i32, i32
  }
  func.func @transform_3(%arg0: i32) -> (i32, i32) {
    %c0_i32 = arith.constant 0 : i32
    %c0_i32_0 = arith.constant 0 : i32
    %c0_i32_1 = arith.constant 0 : i32
    return %c0_i32, %c0_i32_0 : i32, i32
  }
  func.func @transform_4(%arg0: i32) -> (i32, i32) {
    %c0_i32 = arith.constant 0 : i32
    %c0_i32_0 = arith.constant 0 : i32
    %c0_i32_1 = arith.constant 0 : i32
    return %c0_i32, %c0_i32_0 : i32, i32
  }
  func.func @transform_5(%arg0: i32) -> (i32, i32) {
    %c0_i32 = arith.constant 0 : i32
    %c0_i32_0 = arith.constant 0 : i32
    return %arg0, %c0_i32 : i32, i32
  }
  func.func @transform_6(%arg0: i32) -> (i32, i32) {
    %c0_i32 = arith.constant 0 : i32
    %c0_i32_0 = arith.constant 0 : i32
    return %arg0, %c0_i32 : i32, i32
  }
}

</mosaic_0001>

<llo_original>
// kernel: tpu_custom_call.1
$region0: #{tpu_custom_call.1}
  #allocation0 [shape = 'u32[]', space=smem, size = 0x4, offset = 0x4, fixed_abs, tag = 'smem constant byte address 0x4 - core index']
  #allocation1 [shape = 'u32[144,128]{1,0:T(1,128)}', space=vmem, size = 0x12000, scoped, tag = 'internal scratch']
  %s0 = inlined_call_operand.vmem [shape: f32[256,16], index: 0, kind: input, shape index: {}]
  %s1 = inlined_call_operand.vmem [shape: f32[16,16], index: 1, kind: input, shape index: {}]
  %s2 = inlined_call_operand.vmem [shape: f32[16,16], index: 2, kind: input, shape index: {}]
  %s3 = inlined_call_operand.vmem [shape: f32[1,16], index: 3, kind: input, shape index: {}]
  %s4 = inlined_call_operand.vmem [shape: f32[1,16], index: 4, kind: input, shape index: {}]
  %s5 = inlined_call_operand.vmem [shape: f32[256,16], index: 5, kind: output, shape index: {0}]
  %s6 = inlined_call_operand.vmem [shape: f32[256,16], index: 6, kind: output, shape index: {1}]
  %7 = xla_tuple %s5, %s6
  %s8 = sld [smem:[#allocation0]]
  $region61: #{tpu_custom_call.1} parent=0
    _
  %s10 = ssub.s32 1, %s8
  %s11 = scalar_select 0, %s10, %s8
  loop: start=0, step=1, limit=4
  $region2: #{tpu_custom_call.1} parent=0 // loop_pre_header
    _
  $region3: #{tpu_custom_call.1} parent=0 // loop_header
    %s13 = sphi 0, %s17
    %p14 = scmp.ge.s32.totalorder %s13, 4
    %s23 = sphi 0, %s25
    %s26 = sphi 0, %s23
    %s27 = sphi 0, %s26
    %s43 = sphi 0, %s27
    %s47 = sphi 0, %s47
    %s49 = sphi 0, %s47
    %s50 = sphi 0, %s49
    %s64 = sphi 0, %s50
    %s68 = sphi 0, %s68
    %s70 = sphi 0, %s68
    %s71 = sphi 0, %s70
    %s85 = sphi 0, %s71
    %s89 = sphi 0, %s89
    %s91 = sphi 0, %s89
    %s92 = sphi 0, %s91
    %s106 = sphi 0, %s92
    %s110 = sphi 0, %s110
    %s112 = sphi 0, %s110
    %s113 = sphi 0, %s112
    %s127 = sphi 0, %s113
    %s133 = sphi 0, %s135
    %s136 = sphi 0, %s133
    %s137 = sphi 0, %s136
    %s153 = sphi 0, %s137
    %s159 = sphi 0, %s161
    %s162 = sphi 0, %s159
    %s163 = sphi 0, %s162
    %s179 = sphi 0, %s163
  $region4: #{tpu_custom_call.1} parent=0 // loop_header_branch
    %16 = sbr.rel (%p14) target = $region8
  $region5: #{tpu_custom_call.1} parent=0 // loop_body
    %s18 = ssub.s32 %s13, 1
    %s19 = ssub.s32 %s13, 2
    %s20 = sadd.s32 %s13, 1
    %s21 = ssub.s32 %s13, %s20
    %p22 = scmp.eq.s32.totalorder %s21, 0
    %s24 = sadd.s32 %s23, 1
    %s25 = scalar_select %p22, %s23, %s24
    %p28 = pneg %p22
    %p29 = scmp.eq.s32.totalorder %s13, 1
    %p30 = por %p28, %p29
    %p31 = scmp.ne.s32.totalorder %s23, %s26
    %p32 = scmp.eq.s32.totalorder %s13, 0
    %p33 = por %p31, %p32
    %p34 = scmp.ne.s32.totalorder %s23, %s26
    %p35 = scmp.eq.s32.totalorder %s18, 1
    %p36 = por %p34, %p35
    %p37 = scmp.ne.s32.totalorder %s26, %s27
    %p38 = scmp.eq.s32.totalorder %s18, 0
    %p39 = por %p37, %p38
    %p40 = scmp.ne.s32.totalorder %s26, %s27
    %p41 = scmp.eq.s32.totalorder %s19, 1
    %p42 = por %p40, %p41
    %p44 = scmp.ne.s32.totalorder %s27, %s43
    %p45 = scmp.eq.s32.totalorder %s19, 0
    %p46 = por %p44, %p45
    %s48 = sadd.s32 %s47, 1
    %p51 = scmp.eq.s32.totalorder %s13, 1
    %p52 = scmp.ne.s32.totalorder %s47, %s49
    %p53 = scmp.eq.s32.totalorder %s13, 0
    %p54 = por %p52, %p53
    %p55 = scmp.ne.s32.totalorder %s47, %s49
    %p56 = scmp.eq.s32.totalorder %s18, 1
    %p57 = por %p55, %p56
    %p58 = scmp.ne.s32.totalorder %s49, %s50
    %p59 = scmp.eq.s32.totalorder %s18, 0
    %p60 = por %p58, %p59
    %p61 = scmp.ne.s32.totalorder %s49, %s50
    %p62 = scmp.eq.s32.totalorder %s19, 1
    %p63 = por %p61, %p62
    %p65 = scmp.ne.s32.totalorder %s50, %s64
    %p66 = scmp.eq.s32.totalorder %s19, 0
    %p67 = por %p65, %p66
    %s69 = sadd.s32 %s68, 1
    %p72 = scmp.eq.s32.totalorder %s13, 1
    %p73 = scmp.ne.s32.totalorder %s68, %s70
    %p74 = scmp.eq.s32.totalorder %s13, 0
    %p75 = por %p73, %p74
    %p76 = scmp.ne.s32.totalorder %s68, %s70
    %p77 = scmp.eq.s32.totalorder %s18, 1
    %p78 = por %p76, %p77
    %p79 = scmp.ne.s32.totalorder %s70, %s71
    %p80 = scmp.eq.s32.totalorder %s18, 0
    %p81 = por %p79, %p80
    %p82 = scmp.ne.s32.totalorder %s70, %s71
    %p83 = scmp.eq.s32.totalorder %s19, 1
    %p84 = por %p82, %p83
    %p86 = scmp.ne.s32.totalorder %s71, %s85
    %p87 = scmp.eq.s32.totalorder %s19, 0
    %p88 = por %p86, %p87
    %s90 = sadd.s32 %s89, 1
    %p93 = scmp.eq.s32.totalorder %s13, 1
    %p94 = scmp.ne.s32.totalorder %s89, %s91
    %p95 = scmp.eq.s32.totalorder %s13, 0
    %p96 = por %p94, %p95
    %p97 = scmp.ne.s32.totalorder %s89, %s91
    %p98 = scmp.eq.s32.totalorder %s18, 1
    %p99 = por %p97, %p98
    %p100 = scmp.ne.s32.totalorder %s91, %s92
    %p101 = scmp.eq.s32.totalorder %s18, 0
    %p102 = por %p100, %p101
    %p103 = scmp.ne.s32.totalorder %s91, %s92
    %p104 = scmp.eq.s32.totalorder %s19, 1
    %p105 = por %p103, %p104
    %p107 = scmp.ne.s32.totalorder %s92, %s106
    %p108 = scmp.eq.s32.totalorder %s19, 0
    %p109 = por %p107, %p108
    %s111 = sadd.s32 %s110, 1
    %p114 = scmp.eq.s32.totalorder %s13, 1
    %p115 = scmp.ne.s32.totalorder %s110, %s112
    %p116 = scmp.eq.s32.totalorder %s13, 0
    %p117 = por %p115, %p116
    %p118 = scmp.ne.s32.totalorder %s110, %s112
    %p119 = scmp.eq.s32.totalorder %s18, 1
    %p120 = por %p118, %p119
    %p121 = scmp.ne.s32.totalorder %s112, %s113
    %p122 = scmp.eq.s32.totalorder %s18, 0
    %p123 = por %p121, %p122
    %p124 = scmp.ne.s32.totalorder %s112, %s113
    %p125 = scmp.eq.s32.totalorder %s19, 1
    %p126 = por %p124, %p125
    %p128 = scmp.ne.s32.totalorder %s113, %s127
    %p129 = scmp.eq.s32.totalorder %s19, 0
    %p130 = por %p128, %p129
    %s131 = ssub.s32 %s13, %s20
    %p132 = scmp.eq.s32.totalorder %s131, 0
    %s134 = sadd.s32 %s133, 1
    %s135 = scalar_select %p132, %s133, %s134
    %p138 = pneg %p132
    %p139 = scmp.eq.s32.totalorder %s13, 1
    %p140 = por %p138, %p139
    %p141 = scmp.ne.s32.totalorder %s133, %s136
    %p142 = scmp.eq.s32.totalorder %s13, 0
    %p143 = por %p141, %p142
    %p144 = scmp.ne.s32.totalorder %s133, %s136
    %p145 = scmp.eq.s32.totalorder %s18, 1
    %p146 = por %p144, %p145
    %p147 = scmp.ne.s32.totalorder %s136, %s137
    %p148 = scmp.eq.s32.totalorder %s18, 0
    %p149 = por %p147, %p148
    %p150 = scmp.ne.s32.totalorder %s136, %s137
    %p151 = scmp.eq.s32.totalorder %s19, 1
    %p152 = por %p150, %p151
    %p154 = scmp.ne.s32.totalorder %s137, %s153
    %p155 = scmp.eq.s32.totalorder %s19, 0
    %p156 = por %p154, %p155
    %s157 = ssub.s32 %s13, %s20
    %p158 = scmp.eq.s32.totalorder %s157, 0
    %s160 = sadd.s32 %s159, 1
    %s161 = scalar_select %p158, %s159, %s160
    %p164 = pneg %p158
    %p165 = scmp.eq.s32.totalorder %s13, 1
    %p166 = por %p164, %p165
    %p167 = scmp.ne.s32.totalorder %s159, %s162
    %p168 = scmp.eq.s32.totalorder %s13, 0
    %p169 = por %p167, %p168
    %p170 = scmp.ne.s32.totalorder %s159, %s162
    %p171 = scmp.eq.s32.totalorder %s18, 1
    %p172 = por %p170, %p171
    %p173 = scmp.ne.s32.totalorder %s162, %s163
    %p174 = scmp.eq.s32.totalorder %s18, 0
    %p175 = por %p173, %p174
    %p176 = scmp.ne.s32.totalorder %s162, %s163
    %p177 = scmp.eq.s32.totalorder %s19, 1
    %p178 = por %p176, %p177
    %p180 = scmp.ne.s32.totalorder %s163, %s179
    %p181 = scmp.eq.s32.totalorder %s19, 0
    %p182 = por %p180, %p181
    %p183 = scmp.le.s32.totalorder 1, %s13
    %p184 = scmp.lt.s32.totalorder %s13, 3
    %p185 = pnand %p183, %p184
    %p186 = pneg %p185
    // Predicated region
    $region9: #{tpu_custom_call.1} parent=5 // pred_check
      _
    $region10: #{tpu_custom_call.1} parent=5 // pred_check_branch
      %188 = sbr.rel (%p185) target = $region12
    $region11: #{tpu_custom_call.1} parent=5 // pred_region
      %s189 = ssub.s32 %s13, 1
      // Predicated region
      $region13: #{tpu_custom_call.1} parent=11 // pred_check
        %p190 = pneg %p60
      $region14: #{tpu_custom_call.1} parent=11 // pred_check_branch
        %192 = sbr.rel (%p190) target = $region16
      $region15: #{tpu_custom_call.1} parent=11 // pred_region
        _
      $region16: #{tpu_custom_call.1} parent=11 // pred_fallthru
        _
      // Predicated region
      $region17: #{tpu_custom_call.1} parent=11 // pred_check
        %p193 = pneg %p81
      $region18: #{tpu_custom_call.1} parent=11 // pred_check_branch
        %195 = sbr.rel (%p193) target = $region20
      $region19: #{tpu_custom_call.1} parent=11 // pred_region
        _
      $region20: #{tpu_custom_call.1} parent=11 // pred_fallthru
        _
      // Predicated region
      $region21: #{tpu_custom_call.1} parent=11 // pred_check
        %p196 = pneg %p102
      $region22: #{tpu_custom_call.1} parent=11 // pred_check_branch
        %198 = sbr.rel (%p196) target = $region24
      $region23: #{tpu_custom_call.1} parent=11 // pred_region
        _
      $region24: #{tpu_custom_call.1} parent=11 // pred_fallthru
        _
      // Predicated region
      $region25: #{tpu_custom_call.1} parent=11 // pred_check
        %p199 = pneg %p123
      $region26: #{tpu_custom_call.1} parent=11 // pred_check_branch
        %201 = sbr.rel (%p199) target = $region28
      $region27: #{tpu_custom_call.1} parent=11 // pred_region
        _
      $region28: #{tpu_custom_call.1} parent=11 // pred_fallthru
        _
    $region12: #{tpu_custom_call.1} parent=5 // pred_fallthru
      _
    %p202 = scmp.lt.s32.totalorder %s13, 2
    // Predicated region
    $region29: #{tpu_custom_call.1} parent=5 // pred_check
      %p203 = pneg %p202
    $region30: #{tpu_custom_call.1} parent=5 // pred_check_branch
      %205 = sbr.rel (%p203) target = $region32
    $region31: #{tpu_custom_call.1} parent=5 // pred_region
      // Predicated region
      $region33: #{tpu_custom_call.1} parent=31 // pred_check
        %p206 = pneg %p33
      $region34: #{tpu_custom_call.1} parent=31 // pred_check_branch
        %208 = sbr.rel (%p206) target = $region36
      $region35: #{tpu_custom_call.1} parent=31 // pred_region
        %s209 = smul.u32 16, %s13
        %p210 = scmp.lt.s32.totalorder %s209, 31
        %s211 = scalar_select %p210, %s209, 31
        %s212 = smul.addr %s211, 8
        %s213 = scalar_lea.vmem %s0, %s212
        %s214 = smul.u32 16, %s13
      $region36: #{tpu_custom_call.1} parent=31 // pred_fallthru
        _
    $region32: #{tpu_custom_call.1} parent=5 // pred_fallthru
      _
    %p215 = scmp.le.s32.totalorder 1, %s13
    %p216 = scmp.lt.s32.totalorder %s13, 3
    %p217 = pnand %p215, %p216
    %p218 = pneg %p217
    // Predicated region
    $region37: #{tpu_custom_call.1} parent=5 // pred_check
      _
    $region38: #{tpu_custom_call.1} parent=5 // pred_check_branch
      %220 = sbr.rel (%p217) target = $region40
    $region39: #{tpu_custom_call.1} parent=5 // pred_region
      %s221 = ssub.s32 %s13, 1
      %s222 = smul.u32 16, %s18
      %p223 = scmp.lt.s32.totalorder %s222, 31
      %s224 = scalar_select %p223, %s222, 31
      %s225 = smul.addr %s224, 8
      %s226 = scalar_lea.vmem %s0, %s225
      %p227 = pneg %p39
      %p228 = pneg %p36
      %p229 = pneg %p60
      %p230 = pneg %p57
      %p231 = pneg %p81
      %p232 = pneg %p78
      %p233 = pneg %p102
      %p234 = pneg %p99
      %p235 = pneg %p123
      %p236 = pneg %p120
      %p237 = pneg %p149
      %p238 = pneg %p146
      %s239 = smul.u32 16, %s18
      %p240 = scmp.lt.s32.totalorder %s239, 31
      %s241 = scalar_select %p240, %s239, 31
      %s242 = smul.addr %s241, 8
      %s243 = scalar_lea.vmem %s5, %s242
      %p244 = pneg %p175
      %p245 = pneg %p172
      %s246 = smul.u32 16, %s18
      %p247 = scmp.lt.s32.totalorder %s246, 31
      %s248 = scalar_select %p247, %s246, 31
      %s249 = smul.addr %s248, 8
      %s250 = scalar_lea.vmem %s6, %s249
      %s251 = smul.u32 16, %s18
      %p252 = scmp.lt.s32.totalorder %s251, 31
      %s253 = scalar_select %p252, %s251, 31
      %s254 = smul.addr %s253, 8
      %s255 = scalar_lea.vmem %s0, %s254
      %s256 = smul.u32 16, %s18
      %s257 = smul.u32 16, %s18
      %p258 = scmp.lt.s32.totalorder %s257, 31
      %s259 = scalar_select %p258, %s257, 31
      %s260 = smul.addr %s259, 8
      %s261 = scalar_lea.vmem %s5, %s260
      %s262 = smul.u32 16, %s18
      %s263 = smul.u32 16, %s18
      %p264 = scmp.lt.s32.totalorder %s263, 31
      %s265 = scalar_select %p264, %s263, 31
      %s266 = smul.addr %s265, 8
      %s267 = scalar_lea.vmem %s6, %s266
      %s268 = smul.u32 16, %s18
      %v270 = vld [vmem:[%s255] sm:$0xff]
      %v271 = vld [vmem:[%s255 + $0x8] sm:$0xff]
      %v272 = vld [vmem:[%s255 + $0x10] sm:$0xff]
      %v273 = vld [vmem:[%s255 + $0x18] sm:$0xff]
      %v274 = vld [vmem:[%s255 + $0x20] sm:$0xff]
      %v275 = vld [vmem:[%s255 + $0x28] sm:$0xff]
      %v276 = vld [vmem:[%s255 + $0x30] sm:$0xff]
      %v277 = vld [vmem:[%s255 + $0x38] sm:$0xff]
      %v278 = vld [vmem:[%s255 + $0x40] sm:$0xff]
      %v279 = vld [vmem:[%s255 + $0x48] sm:$0xff]
      %v280 = vld [vmem:[%s255 + $0x50] sm:$0xff]
      %v281 = vld [vmem:[%s255 + $0x58] sm:$0xff]
      %v282 = vld [vmem:[%s255 + $0x60] sm:$0xff]
      %v283 = vld [vmem:[%s255 + $0x68] sm:$0xff]
      %v284 = vld [vmem:[%s255 + $0x70] sm:$0xff]
      %v285 = vld [vmem:[%s255 + $0x78] sm:$0xff]
      %v286 = vpack.c.bf16 %v271, %v270
      %v287 = vpack.c.bf16 %v273, %v272
      %v288 = vpack.c.bf16 %v275, %v274
      %v289 = vpack.c.bf16 %v277, %v276
      %v290 = vpack.c.bf16 %v279, %v278
      %v291 = vpack.c.bf16 %v281, %v280
      %v292 = vpack.c.bf16 %v283, %v282
      %v293 = vpack.c.bf16 %v285, %v284
      %v294 = vld [vmem:[%s1] sm:$0xff]
      %v295 = vld [vmem:[%s1 + $0x8] sm:$0xff]
      %v296 = vpack.c.bf16 %v295, %v294
      %v297 = vld [vmem:[%s3] sm:$0x1]
      %v299 = vlaneseq
      %v300 = vshrl.u32 %v299, 7
      %v301 = vsub.s32 0, %v300
      %v302 = vrot.slane %v297, %v301
      %vm304 = vcmask 130048
      %v306 = vsel %vm304, %v286, 0
      %v309 = vsel %vm304, %v287, 0
      %v312 = vsel %vm304, %v288, 0
      %v315 = vsel %vm304, %v289, 0
      %v318 = vsel %vm304, %v290, 0
      %v321 = vsel %vm304, %v291, 0
      %v324 = vsel %vm304, %v292, 0
      %v327 = vsel %vm304, %v293, 0
      %329 = vmatprep.subr.bf16.mxu0 0
      %330 = vmatpush1.bf16.msra.mxu0 0
      %331 = vmatprep.subr.bf16.mxu0 0
      %332 = vmatpush1.bf16.msra.mxu0 0
      %333 = vmatprep.subr.bf16.mxu0 0
      %334 = vmatpush1.bf16.msra.mxu0 0
      %335 = vmatprep.subr.bf16.mxu0 0
      %336 = vmatpush1.bf16.msra.mxu0 0
      %337 = vmatprep.subr.bf16.mxu0 0
      %338 = vmatpush1.bf16.msra.mxu0 0
      %339 = vmatprep.subr.bf16.mxu0 0
      %340 = vmatpush1.bf16.msra.mxu0 0
      %341 = vmatprep.subr.bf16.mxu0 0
      %342 = vmatpush1.bf16.msra.mxu0 0
      %343 = vmatprep.subr.bf16.mxu0 0
      %344 = vmatpush1.bf16.msra.mxu0 %v296
      %345 = vmatprep.subr.bf16.mxu0 0
      %346 = vmatpush2.bf16.msra.mxu0 0
      %347 = vmatprep.subr.bf16.mxu0 0
      %348 = vmatpush2.bf16.msra.mxu0 0
      %349 = vmatprep.subr.bf16.mxu0 0
      %350 = vmatpush2.bf16.msra.mxu0 0
      %351 = vmatprep.subr.bf16.mxu0 0
      %352 = vmatpush2.bf16.msra.mxu0 0
      %353 = vmatprep.subr.bf16.mxu0 0
      %354 = vmatpush2.bf16.msra.mxu0 0
      %355 = vmatprep.subr.bf16.mxu0 0
      %356 = vmatpush2.bf16.msra.mxu0 0
      %357 = vmatprep.subr.bf16.mxu0 0
      %358 = vmatpush2.bf16.msra.mxu0 0
      %359 = vmatprep.subr.bf16.mxu0 0
      %360 = vmatpush2.bf16.msra.mxu0 0
      %361 = vmatprep.mubr.bf16.mxu0 0
      %362 = vmatmul.mubr.bf16.gmra.mxu0 %v306
      %v363 = vpop.f32.mrf.mxu0
      %v364 = vadd.f32 %v302, %v363
      %v365 = vpop.f32.mrf.mxu0
      %v366 = vpop.f32.mrf.mxu0
      %v367 = vadd.f32 %v302, %v366
      %v368 = vpop.f32.mrf.mxu0
      %369 = vmatprep.mubr.bf16.mxu0 0
      %370 = vmatmul.mubr.bf16.gmra.mxu0 %v309
      %v371 = vpop.f32.mrf.mxu0
      %v372 = vadd.f32 %v302, %v371
      %v373 = vpop.f32.mrf.mxu0
      %v374 = vpop.f32.mrf.mxu0
      %v375 = vadd.f32 %v302, %v374
      %v376 = vpop.f32.mrf.mxu0
      %377 = vmatprep.mubr.bf16.mxu0 0
      %378 = vmatmul.mubr.bf16.gmra.mxu0 %v312
      %v379 = vpop.f32.mrf.mxu0
      %v380 = vadd.f32 %v302, %v379
      %v381 = vpop.f32.mrf.mxu0
      %v382 = vpop.f32.mrf.mxu0
      %v383 = vadd.f32 %v302, %v382
      %v384 = vpop.f32.mrf.mxu0
      %385 = vmatprep.mubr.bf16.mxu0 0
      %386 = vmatmul.mubr.bf16.gmra.mxu0 %v315
      %v387 = vpop.f32.mrf.mxu0
      %v388 = vadd.f32 %v302, %v387
      %v389 = vpop.f32.mrf.mxu0
      %v390 = vpop.f32.mrf.mxu0
      %v391 = vadd.f32 %v302, %v390
      %v392 = vpop.f32.mrf.mxu0
      %393 = vmatprep.mubr.bf16.mxu0 0
      %394 = vmatmul.mubr.bf16.gmra.mxu0 %v318
      %v395 = vpop.f32.mrf.mxu0
      %v396 = vadd.f32 %v302, %v395
      %v397 = vpop.f32.mrf.mxu0
      %v398 = vpop.f32.mrf.mxu0
      %v399 = vadd.f32 %v302, %v398
      %v400 = vpop.f32.mrf.mxu0
      %401 = vmatprep.mubr.bf16.mxu0 0
      %402 = vmatmul.mubr.bf16.gmra.mxu0 %v321
      %v403 = vpop.f32.mrf.mxu0
      %v404 = vadd.f32 %v302, %v403
      %v405 = vpop.f32.mrf.mxu0
      %v406 = vpop.f32.mrf.mxu0
      %v407 = vadd.f32 %v302, %v406
      %v408 = vpop.f32.mrf.mxu0
      %409 = vmatprep.mubr.bf16.mxu0 0
      %410 = vmatmul.mubr.bf16.gmra.mxu0 %v324
      %v411 = vpop.f32.mrf.mxu0
      %v412 = vadd.f32 %v302, %v411
      %v413 = vpop.f32.mrf.mxu0
      %v414 = vpop.f32.mrf.mxu0
      %v415 = vadd.f32 %v302, %v414
      %v416 = vpop.f32.mrf.mxu0
      %417 = vmatprep.mubr.bf16.mxu0 0
      %418 = vmatmul.mubr.bf16.gmra.mxu0 %v327
      %v419 = vpop.f32.mrf.mxu0
      %v420 = vadd.f32 %v302, %v419
      %v421 = vpop.f32.mrf.mxu0
      %v422 = vpop.f32.mrf.mxu0
      %v423 = vadd.f32 %v302, %v422
      %v424 = vpop.f32.mrf.mxu0
      %425 = vdwg.mxu0
      %426 = vst.msk [vmem:[%s261] sm:$0xff] %vm304, %v364
      %427 = vst.msk [vmem:[%s261 + $0x8] sm:$0xff] %vm304, %v367
      %428 = vst.msk [vmem:[%s261 + $0x10] sm:$0xff] %vm304, %v372
      %429 = vst.msk [vmem:[%s261 + $0x18] sm:$0xff] %vm304, %v375
      %430 = vst.msk [vmem:[%s261 + $0x20] sm:$0xff] %vm304, %v380
      %431 = vst.msk [vmem:[%s261 + $0x28] sm:$0xff] %vm304, %v383
      %432 = vst.msk [vmem:[%s261 + $0x30] sm:$0xff] %vm304, %v388
      %433 = vst.msk [vmem:[%s261 + $0x38] sm:$0xff] %vm304, %v391
      %434 = vst.msk [vmem:[%s261 + $0x40] sm:$0xff] %vm304, %v396
      %435 = vst.msk [vmem:[%s261 + $0x48] sm:$0xff] %vm304, %v399
      %436 = vst.msk [vmem:[%s261 + $0x50] sm:$0xff] %vm304, %v404
      %437 = vst.msk [vmem:[%s261 + $0x58] sm:$0xff] %vm304, %v407
      %438 = vst.msk [vmem:[%s261 + $0x60] sm:$0xff] %vm304, %v412
      %439 = vst.msk [vmem:[%s261 + $0x68] sm:$0xff] %vm304, %v415
      %440 = vst.msk [vmem:[%s261 + $0x70] sm:$0xff] %vm304, %v420
      %441 = vst.msk [vmem:[%s261 + $0x78] sm:$0xff] %vm304, %v423
      %v442 = vld [vmem:[%s2] sm:$0xff]
      %v443 = vld [vmem:[%s2 + $0x8] sm:$0xff]
      %v444 = vpack.c.bf16 %v443, %v442
      %v445 = vld [vmem:[%s4] sm:$0x1]
      %v447 = vlaneseq
      %v448 = vshrl.u32 %v447, 7
      %v449 = vsub.s32 0, %v448
      %v450 = vrot.slane %v445, %v449
      %452 = vmatprep.subr.bf16.mxu0 0
      %453 = vmatpush1.bf16.msra.mxu0 0
      %454 = vmatprep.subr.bf16.mxu0 0
      %455 = vmatpush1.bf16.msra.mxu0 0
      %456 = vmatprep.subr.bf16.mxu0 0
      %457 = vmatpush1.bf16.msra.mxu0 0
      %458 = vmatprep.subr.bf16.mxu0 0
      %459 = vmatpush1.bf16.msra.mxu0 0
      %460 = vmatprep.subr.bf16.mxu0 0
      %461 = vmatpush1.bf16.msra.mxu0 0
      %462 = vmatprep.subr.bf16.mxu0 0
      %463 = vmatpush1.bf16.msra.mxu0 0
      %464 = vmatprep.subr.bf16.mxu0 0
      %465 = vmatpush1.bf16.msra.mxu0 0
      %466 = vmatprep.subr.bf16.mxu0 0
      %467 = vmatpush1.bf16.msra.mxu0 %v444
      %468 = vmatprep.subr.bf16.mxu0 0
      %469 = vmatpush2.bf16.msra.mxu0 0
      %470 = vmatprep.subr.bf16.mxu0 0
      %471 = vmatpush2.bf16.msra.mxu0 0
      %472 = vmatprep.subr.bf16.mxu0 0
      %473 = vmatpush2.bf16.msra.mxu0 0
      %474 = vmatprep.subr.bf16.mxu0 0
      %475 = vmatpush2.bf16.msra.mxu0 0
      %476 = vmatprep.subr.bf16.mxu0 0
      %477 = vmatpush2.bf16.msra.mxu0 0
      %478 = vmatprep.subr.bf16.mxu0 0
      %479 = vmatpush2.bf16.msra.mxu0 0
      %480 = vmatprep.subr.bf16.mxu0 0
      %481 = vmatpush2.bf16.msra.mxu0 0
      %482 = vmatprep.subr.bf16.mxu0 0
      %483 = vmatpush2.bf16.msra.mxu0 0
      %484 = vmatprep.mubr.bf16.mxu0 0
      %485 = vmatmul.mubr.bf16.gmra.mxu0 %v306
      %v486 = vpop.f32.mrf.mxu0
      %v487 = vadd.f32 %v450, %v486
      %v488 = vpop.f32.mrf.mxu0
      %v489 = vpop.f32.mrf.mxu0
      %v490 = vadd.f32 %v450, %v489
      %v491 = vpop.f32.mrf.mxu0
      %492 = vmatprep.mubr.bf16.mxu0 0
      %493 = vmatmul.mubr.bf16.gmra.mxu0 %v309
      %v494 = vpop.f32.mrf.mxu0
      %v495 = vadd.f32 %v450, %v494
      %v496 = vpop.f32.mrf.mxu0
      %v497 = vpop.f32.mrf.mxu0
      %v498 = vadd.f32 %v450, %v497
      %v499 = vpop.f32.mrf.mxu0
      %500 = vmatprep.mubr.bf16.mxu0 0
      %501 = vmatmul.mubr.bf16.gmra.mxu0 %v312
      %v502 = vpop.f32.mrf.mxu0
      %v503 = vadd.f32 %v450, %v502
      %v504 = vpop.f32.mrf.mxu0
      %v505 = vpop.f32.mrf.mxu0
      %v506 = vadd.f32 %v450, %v505
      %v507 = vpop.f32.mrf.mxu0
      %508 = vmatprep.mubr.bf16.mxu0 0
      %509 = vmatmul.mubr.bf16.gmra.mxu0 %v315
      %v510 = vpop.f32.mrf.mxu0
      %v511 = vadd.f32 %v450, %v510
      %v512 = vpop.f32.mrf.mxu0
      %v513 = vpop.f32.mrf.mxu0
      %v514 = vadd.f32 %v450, %v513
      %v515 = vpop.f32.mrf.mxu0
      %516 = vmatprep.mubr.bf16.mxu0 0
      %517 = vmatmul.mubr.bf16.gmra.mxu0 %v318
      %v518 = vpop.f32.mrf.mxu0
      %v519 = vadd.f32 %v450, %v518
      %v520 = vpop.f32.mrf.mxu0
      %v521 = vpop.f32.mrf.mxu0
      %v522 = vadd.f32 %v450, %v521
      %v523 = vpop.f32.mrf.mxu0
      %524 = vmatprep.mubr.bf16.mxu0 0
      %525 = vmatmul.mubr.bf16.gmra.mxu0 %v321
      %v526 = vpop.f32.mrf.mxu0
      %v527 = vadd.f32 %v450, %v526
      %v528 = vpop.f32.mrf.mxu0
      %v529 = vpop.f32.mrf.mxu0
      %v530 = vadd.f32 %v450, %v529
      %v531 = vpop.f32.mrf.mxu0
      %532 = vmatprep.mubr.bf16.mxu0 0
      %533 = vmatmul.mubr.bf16.gmra.mxu0 %v324
      %v534 = vpop.f32.mrf.mxu0
      %v535 = vadd.f32 %v450, %v534
      %v536 = vpop.f32.mrf.mxu0
      %v537 = vpop.f32.mrf.mxu0
      %v538 = vadd.f32 %v450, %v537
      %v539 = vpop.f32.mrf.mxu0
      %540 = vmatprep.mubr.bf16.mxu0 0
      %541 = vmatmul.mubr.bf16.gmra.mxu0 %v327
      %v542 = vpop.f32.mrf.mxu0
      %v543 = vadd.f32 %v450, %v542
      %v544 = vpop.f32.mrf.mxu0
      %v545 = vpop.f32.mrf.mxu0
      %v546 = vadd.f32 %v450, %v545
      %v547 = vpop.f32.mrf.mxu0
      %548 = vdwg.mxu0
      %549 = vst.msk [vmem:[%s267] sm:$0xff] %vm304, %v487
      %550 = vst.msk [vmem:[%s267 + $0x8] sm:$0xff] %vm304, %v490
      %551 = vst.msk [vmem:[%s267 + $0x10] sm:$0xff] %vm304, %v495
      %552 = vst.msk [vmem:[%s267 + $0x18] sm:$0xff] %vm304, %v498
      %553 = vst.msk [vmem:[%s267 + $0x20] sm:$0xff] %vm304, %v503
      %554 = vst.msk [vmem:[%s267 + $0x28] sm:$0xff] %vm304, %v506
      %555 = vst.msk [vmem:[%s267 + $0x30] sm:$0xff] %vm304, %v511
      %556 = vst.msk [vmem:[%s267 + $0x38] sm:$0xff] %vm304, %v514
      %557 = vst.msk [vmem:[%s267 + $0x40] sm:$0xff] %vm304, %v519
      %558 = vst.msk [vmem:[%s267 + $0x48] sm:$0xff] %vm304, %v522
      %559 = vst.msk [vmem:[%s267 + $0x50] sm:$0xff] %vm304, %v527
      %560 = vst.msk [vmem:[%s267 + $0x58] sm:$0xff] %vm304, %v530
      %561 = vst.msk [vmem:[%s267 + $0x60] sm:$0xff] %vm304, %v535
      %562 = vst.msk [vmem:[%s267 + $0x68] sm:$0xff] %vm304, %v538
      %563 = vst.msk [vmem:[%s267 + $0x70] sm:$0xff] %vm304, %v543
      %564 = vst.msk [vmem:[%s267 + $0x78] sm:$0xff] %vm304, %v546
      %s565 = smul.u32 16, %s18
      %p566 = scmp.lt.s32.totalorder %s565, 31
      %s567 = scalar_select %p566, %s565, 31
      %s568 = smul.addr %s567, 8
      %s569 = scalar_lea.vmem %s5, %s568
      %s570 = smul.u32 16, %s18
      %p571 = scmp.lt.s32.totalorder %s570, 31
      %s572 = scalar_select %p571, %s570, 31
      %s573 = smul.addr %s572, 8
      %s574 = scalar_lea.vmem %s6, %s573
      // Predicated region
      $region41: #{tpu_custom_call.1} parent=39 // pred_check
        %p575 = pneg %p146
      $region42: #{tpu_custom_call.1} parent=39 // pred_check_branch
        %577 = sbr.rel (%p575) target = $region44
      $region43: #{tpu_custom_call.1} parent=39 // pred_region
        %s578 = smul.u32 16, %s18
      $region44: #{tpu_custom_call.1} parent=39 // pred_fallthru
        _
      // Predicated region
      $region45: #{tpu_custom_call.1} parent=39 // pred_check
        %p579 = pneg %p172
      $region46: #{tpu_custom_call.1} parent=39 // pred_check_branch
        %581 = sbr.rel (%p579) target = $region48
      $region47: #{tpu_custom_call.1} parent=39 // pred_region
        %s582 = smul.u32 16, %s18
      $region48: #{tpu_custom_call.1} parent=39 // pred_fallthru
        _
    $region40: #{tpu_custom_call.1} parent=5 // pred_fallthru
      _
    %p583 = scmp.le.s32.totalorder 2, %s13
    // Predicated region
    $region49: #{tpu_custom_call.1} parent=5 // pred_check
      %p584 = pneg %p583
    $region50: #{tpu_custom_call.1} parent=5 // pred_check_branch
      %586 = sbr.rel (%p584) target = $region52
    $region51: #{tpu_custom_call.1} parent=5 // pred_region
      %s587 = ssub.s32 %s13, 2
      // Predicated region
      $region53: #{tpu_custom_call.1} parent=51 // pred_check
        %p588 = pneg %p152
      $region54: #{tpu_custom_call.1} parent=51 // pred_check_branch
        %590 = sbr.rel (%p588) target = $region56
      $region55: #{tpu_custom_call.1} parent=51 // pred_region
        %s591 = smul.u32 16, %s19
        %p592 = scmp.lt.s32.totalorder %s591, 31
        %s593 = scalar_select %p592, %s591, 31
        %s594 = smul.addr %s593, 8
        %s595 = scalar_lea.vmem %s5, %s594
      $region56: #{tpu_custom_call.1} parent=51 // pred_fallthru
        _
      // Predicated region
      $region57: #{tpu_custom_call.1} parent=51 // pred_check
        %p596 = pneg %p178
      $region58: #{tpu_custom_call.1} parent=51 // pred_check_branch
        %598 = sbr.rel (%p596) target = $region60
      $region59: #{tpu_custom_call.1} parent=51 // pred_region
        %s599 = smul.u32 16, %s19
        %p600 = scmp.lt.s32.totalorder %s599, 31
        %s601 = scalar_select %p600, %s599, 31
        %s602 = smul.addr %s601, 8
        %s603 = scalar_lea.vmem %s6, %s602
      $region60: #{tpu_custom_call.1} parent=51 // pred_fallthru
        _
    $region52: #{tpu_custom_call.1} parent=5 // pred_fallthru
      _
  $region6: #{tpu_custom_call.1} parent=0 // loop_footer
    %s17 = sadd.s32 1, %s13
  $region7: #{tpu_custom_call.1} parent=0 // loop_footer_branch
    %12 = sbr.rel target = $region3
  $region8: #{tpu_custom_call.1} parent=0 // loop_exit
    _

</llo_original>
